<compile_context>
chip_gen: v6e
topology: v6e:2x2x1
jax: 0.10.0
libtpu: 0.0.40
codegen_flags: <defaults>
</compile_context>

<pallas_src>
import functools

import jax
import jax.numpy as jnp
import numpy as np
from jax.experimental import pallas as pl
from jax.experimental.pallas import tpu as pltpu

ALPHA = 0.75
GAMMA = 2.0  # statically 2 -> implemented as an explicit square


def _multibox_focal_kernel(conf_ref, labels_ref, boxes_ref, out_ref, *, num_pos):
    # conf_ref  : (C, TL)  float   (class-major, priors along lanes)
    # labels_ref: (1, TL)  int32
    # boxes_ref : (8, TL)  float   rows 0-3 = predicted, rows 4-7 = gt
    # out_ref   : (8, TL)  float32 rows 0-3 = sl1, row 4 = cls, rows 5-7 unused
    conf = conf_ref[...].astype(jnp.float32)            # (C, TL)
    labels = labels_ref[...]                            # (1, TL) int32
    pred = boxes_ref[0:4, :].astype(jnp.float32)        # (4, TL)
    gt = boxes_ref[4:8, :].astype(jnp.float32)          # (4, TL)

    # --- cross entropy (log-softmax; class reductions are sublane reduces) ---
    m = jnp.max(conf, axis=0, keepdims=True)            # (1, TL)
    z = conf - m                                        # (C, TL)
    sumexp = jnp.sum(jnp.exp(z), axis=0, keepdims=True)  # (1, TL)
    lse = jnp.log(sumexp)                               # (1, TL)

    class_ids = jax.lax.broadcasted_iota(jnp.int32, conf.shape, 0)  # (C, TL)
    # Single fused one-hot pass: select z at the label, zero elsewhere.
    # NOTE: labels outside [0, C) yield z_label = 0 -> ce = lse (no wraparound).
    z_label = jnp.sum(jnp.where(class_ids == labels, z, 0.0),
                      axis=0, keepdims=True)            # (1, TL)
    ce = lse - z_label                                  # (1, TL)

    # --- focal term: ALPHA and 1/num_pos folded into one constant ---
    pt = jnp.exp(-ce)                                   # (1, TL), cheap EUP pass
    one_minus_pt = 1.0 - pt
    scaled_focal = (one_minus_pt * one_minus_pt) * jnp.float32(ALPHA / num_pos)

    # --- smooth L1 (beta = 1.0, PyTorch default) ---
    diff = pred - gt
    absd = jnp.abs(diff)
    sl1 = jnp.where(absd < 1.0, 0.5 * diff * diff, absd - 0.5)  # (4, TL)

    out_ref[0:4, :] = scaled_focal * sl1                # rows 0-3: sl1
    out_ref[4:5, :] = scaled_focal * ce                 # row 4   : cls
    out_ref[5:8, :] = jnp.zeros((3, out_ref.shape[-1]), dtype=out_ref.dtype)


def _choose_lane_tile(n_priors, num_classes, *,
                      vmem_budget_bytes=12 * 1024 * 1024,
                      max_lane_tile=16384,
                      min_blocks=4):
    """Pick a lane tile: as big as the VMEM budget allows, multiple of 128,
    but keep at least ~min_blocks grid steps (v7x megacore) and >= 128."""
    c_sub = pl.cdiv(num_classes, 8) * 8
    # Double-buffered f32 sublanes resident per lane column:
    #   conf (c_sub) + boxes (8) + labels (8, sublane-padded) + out (8)
    bytes_per_lane = 2 * 4 * (c_sub + 24)
    tile = vmem_budget_bytes // bytes_per_lane
    tile = min(tile, max_lane_tile)
    n128 = 128 * pl.cdiv(n_priors, 128)
    tile = min(tile, max(128, n128 // min_blocks))
    tile = max(128, (tile // 128) * 128)
    return int(tile)


def multibox_loss_focal(confidence, predicted_locations, labels, gt_locations,
                        *, lane_tile=None):
    """Pallas implementation of MultiboxLoss.forward (focal branch).

    Args:
      confidence: (B, P, C) float (f32 or bf16)
      predicted_locations: (B, P, 4) float
      labels: (B, P) int
      gt_locations: (B, P, 4) float
    Returns:
      (smooth_l1_loss / num_pos) of shape (B*P, 4),
      (classification_loss / num_pos) of shape (B*P,)
    """
    B, P, C = confidence.shape
    N = B * P

    if lane_tile is None:
        lane_tile = _choose_lane_tile(N, C)
    n_pad = pl.cdiv(N, lane_tile) * lane_tile
    pad = n_pad - N

    # Lane-dense class-major layout: priors along lanes (last dim).
    # transpose + concat + pad are copy-like and fuse into one materialization
    # per input in XLA; the layout change is required for cheap sublane class
    # reductions and wide unmasked lane stores.
    conf_t = jnp.pad(confidence.reshape(N, C).T, ((0, 0), (0, pad)))      # (C, n_pad)
    lab_t = jnp.pad(labels.reshape(1, N).astype(jnp.int32),
                    ((0, 0), (0, pad)))                                   # (1, n_pad)
    boxes_t = jnp.pad(
        jnp.concatenate([predicted_locations.reshape(N, 4).T,
                         gt_locations.reshape(N, 4).T], axis=0),
        ((0, 0), (0, pad)))                                               # (8, n_pad)

    kernel = functools.partial(_multibox_focal_kernel, num_pos=N)

    grid = (n_pad // lane_tile,)
    out = pl.pallas_call(
        kernel,
        out_shape=jax.ShapeDtypeStruct((8, n_pad), jnp.float32),
        grid_spec=pltpu.PrefetchScalarGridSpec(
            num_scalar_prefetch=0,
            grid=grid,
            in_specs=[
                pl.BlockSpec((C, lane_tile), lambda i: (0, i)),
                pl.BlockSpec((1, lane_tile), lambda i: (0, i)),
                pl.BlockSpec((8, lane_tile), lambda i: (0, i)),
            ],
            out_specs=pl.BlockSpec((8, lane_tile), lambda i: (0, i)),
        ),
        compiler_params=pltpu.CompilerParams(
            dimension_semantics=("parallel",),
            # Raise scoped VMEM (v5e default is 16 MiB); 32 MiB is safe on
            # v5e/v6e (128 MiB physical) and v7x (64 MiB physical per core),
            # and the tile chooser budgets the working set to ~12 MiB.
            vmem_limit_bytes=32 * 1024 * 1024,
        ),
    )(conf_t, lab_t, boxes_t)

    # Strip padding / unpack and return the module's output layout.
    sl1 = out[0:4, :N].T          # (N, 4)
    cls = out[4, :N]              # (N,)
    return sl1, cls


def _reference(confidence, predicted_locations, labels, gt_locations):
    """Pure-JAX reference (mirrors the PyTorch focal branch exactly)."""
    B, P, C = confidence.shape
    N = B * P
    conf = confidence.reshape(N, C).astype(jnp.float32)
    pred = predicted_locations.reshape(N, 4).astype(jnp.float32)
    gt = gt_locations.reshape(N, 4).astype(jnp.float32)
    lab = labels.reshape(N)

    logp = jax.nn.log_softmax(conf, axis=-1)
    ce = -jnp.take_along_axis(logp, lab[:, None], axis=-1)[:, 0]
    pt = jnp.exp(-ce)
    focal = ALPHA * (1.0 - pt) ** GAMMA
    cls = focal * ce

    diff = pred - gt
    absd = jnp.abs(diff)
    sl1 = jnp.where(absd < 1.0, 0.5 * diff * diff, absd - 0.5)
    sl1 = focal[:, None] * sl1
    return sl1 / N, cls / N


if __name__ == "__main__":
    key = jax.random.PRNGKey(0)
    B, P, C = 2, 16, 8  # batch, num_priors, num_classes

    k1, k2, k3, k4, k5 = jax.random.split(key, 5)
    # Deterministic "parameter": priors (unused in the focal forward branch,
    # kept for parity with the module's __init__).
    priors = jax.random.uniform(k5, (P, 4), dtype=jnp.float32)

    confidence = jax.random.normal(k1, (B, P, C), dtype=jnp.float32)
    predicted_locations = jax.random.normal(k2, (B, P, 4), dtype=jnp.float32)
    gt_locations = predicted_locations + 0.5 * jax.random.normal(
        k3, (B, P, 4), dtype=jnp.float32)
    labels = jax.random.randint(k4, (B, P), 0, C, dtype=jnp.int32)

    sl1, cls = multibox_loss_focal(
        confidence, predicted_locations, labels, gt_locations)
    jax.block_until_ready((sl1, cls))

    sl1_ref, cls_ref = _reference(
        confidence, predicted_locations, labels, gt_locations)
    np.testing.assert_allclose(np.asarray(sl1), np.asarray(sl1_ref),
                               rtol=1e-5, atol=1e-5)
    np.testing.assert_allclose(np.asarray(cls), np.asarray(cls_ref),
                               rtol=1e-5, atol=1e-5)

    print("KERNEL_OK")
</pallas_src>

<mosaic_0001>
module attributes {stable_mosaic.version = 11 : i64} {
  func.func @_multibox_focal_kernel(%arg0: i32, %arg1: memref<8x128xf32, #tpu.memory_space<vmem>>, %arg2: memref<1x128xi32, #tpu.memory_space<vmem>>, %arg3: memref<8x128xf32, #tpu.memory_space<vmem>>, %arg4: memref<8x128xf32, #tpu.memory_space<vmem>>) attributes {dimension_semantics = [#tpu.dimension_semantics<parallel>], iteration_bounds = array<i64: 1>, scalar_prefetch = 0 : i64, scratch_operands = 0 : i64, tpu.core_type = #tpu.core_type<tc>, window_params = [{transform_indices = @transform_0, window_bounds = array<i64: 8, 128>}, {transform_indices = @transform_1, window_bounds = array<i64: 1, 128>}, {transform_indices = @transform_2, window_bounds = array<i64: 8, 128>}, {transform_indices = @transform_3, window_bounds = array<i64: 8, 128>}]} {
    %c0 = arith.constant 0 : index
    %c0_0 = arith.constant 0 : index
    %0 = vector.load %arg1[%c0, %c0_0] : memref<8x128xf32, #tpu.memory_space<vmem>>, vector<8x128xf32>
    %c0_1 = arith.constant 0 : index
    %c0_2 = arith.constant 0 : index
    %1 = vector.load %arg2[%c0_1, %c0_2] : memref<1x128xi32, #tpu.memory_space<vmem>>, vector<1x128xi32>
    %c0_3 = arith.constant 0 : index
    %c0_4 = arith.constant 0 : index
    %2 = vector.load %arg3[%c0_3, %c0_4] : memref<8x128xf32, #tpu.memory_space<vmem>>, vector<4x128xf32>
    %c4 = arith.constant 4 : index
    %c0_5 = arith.constant 0 : index
    %3 = vector.load %arg3[%c4, %c0_5] : memref<8x128xf32, #tpu.memory_space<vmem>>, vector<4x128xf32>
    %cst = arith.constant dense<0xFF800000> : vector<128xf32>
    %4 = vector.multi_reduction <maximumf>, %0, %cst [0] : vector<8x128xf32> to vector<128xf32>
    %5 = vector.shape_cast %4 : vector<128xf32> to vector<1x128xf32>
    %6 = vector.broadcast %5 : vector<1x128xf32> to vector<8x128xf32>
    %7 = arith.subf %0, %6 : vector<8x128xf32>
    %8 = math.exp %7 : vector<8x128xf32>
    %cst_6 = arith.constant dense<0.000000e+00> : vector<128xf32>
    %9 = vector.multi_reduction <add>, %8, %cst_6 [0] : vector<8x128xf32> to vector<128xf32>
    %10 = vector.shape_cast %9 : vector<128xf32> to vector<1x128xf32>
    %11 = math.log %10 : vector<1x128xf32>
    %12 = tpu.iota {dimensions = array<i32: 0>} : vector<8x128xi32>
    %13 = vector.broadcast %1 : vector<1x128xi32> to vector<8x128xi32>
    %14 = arith.cmpi eq, %12, %13 : vector<8x128xi32>
    %cst_7 = arith.constant 0.000000e+00 : f32
    %15 = vector.broadcast %cst_7 : f32 to vector<8x128xf32>
    %16 = arith.select %14, %7, %15 : vector<8x128xi1>, vector<8x128xf32>
    %cst_8 = arith.constant dense<0.000000e+00> : vector<128xf32>
    %17 = vector.multi_reduction <add>, %16, %cst_8 [0] : vector<8x128xf32> to vector<128xf32>
    %18 = vector.shape_cast %17 : vector<128xf32> to vector<1x128xf32>
    %19 = arith.subf %11, %18 : vector<1x128xf32>
    %cst_9 = arith.constant 0.000000e+00 : f32
    %20 = vector.broadcast %cst_9 : f32 to vector<1x128xf32>
    %21 = arith.subf %20, %19 : vector<1x128xf32>
    %22 = math.exp %21 : vector<1x128xf32>
    %cst_10 = arith.constant 1.000000e+00 : f32
    %23 = vector.broadcast %cst_10 : f32 to vector<1x128xf32>
    %24 = arith.subf %23, %22 : vector<1x128xf32>
    %25 = arith.mulf %24, %24 : vector<1x128xf32>
    %cst_11 = arith.constant 2.343750e-02 : f32
    %26 = vector.broadcast %cst_11 : f32 to vector<1x128xf32>
    %27 = arith.mulf %25, %26 : vector<1x128xf32>
    %28 = arith.subf %2, %3 : vector<4x128xf32>
    %29 = math.absf %28 : vector<4x128xf32>
    %cst_12 = arith.constant 1.000000e+00 : f32
    %30 = vector.broadcast %cst_12 : f32 to vector<4x128xf32>
    %31 = arith.cmpf olt, %29, %30 : vector<4x128xf32>
    %cst_13 = arith.constant 5.000000e-01 : f32
    %32 = vector.broadcast %cst_13 : f32 to vector<4x128xf32>
    %33 = arith.mulf %32, %28 : vector<4x128xf32>
    %34 = arith.mulf %33, %28 : vector<4x128xf32>
    %cst_14 = arith.constant 5.000000e-01 : f32
    %35 = vector.broadcast %cst_14 : f32 to vector<4x128xf32>
    %36 = arith.subf %29, %35 : vector<4x128xf32>
    %37 = arith.select %31, %34, %36 : vector<4x128xi1>, vector<4x128xf32>
    %38 = vector.broadcast %27 : vector<1x128xf32> to vector<4x128xf32>
    %39 = arith.mulf %38, %37 : vector<4x128xf32>
    %c0_15 = arith.constant 0 : index
    %c0_16 = arith.constant 0 : index
    %40 = vector.load %arg4[%c0_15, %c0_16] : memref<8x128xf32, #tpu.memory_space<vmem>>, vector<4x128xf32>
    tpu.vector_store %arg4[%c0_15, %c0_16], %39 {strides = array<i32>} : memref<8x128xf32, #tpu.memory_space<vmem>>, vector<4x128xf32>,
    %41 = arith.mulf %27, %19 : vector<1x128xf32>
    %c4_17 = arith.constant 4 : index
    %c0_18 = arith.constant 0 : index
    %42 = vector.load %arg4[%c4_17, %c0_18] : memref<8x128xf32, #tpu.memory_space<vmem>>, vector<1x128xf32>
    tpu.vector_store %arg4[%c4_17, %c0_18], %41 {strides = array<i32>} : memref<8x128xf32, #tpu.memory_space<vmem>>, vector<1x128xf32>,
    %cst_19 = arith.constant 0.000000e+00 : f32
    %43 = vector.broadcast %cst_19 : f32 to vector<3x128xf32>
    %c5 = arith.constant 5 : index
    %c0_20 = arith.constant 0 : index
    %44 = vector.load %arg4[%c5, %c0_20] : memref<8x128xf32, #tpu.memory_space<vmem>>, vector<3x128xf32>
    tpu.vector_store %arg4[%c5, %c0_20], %43 {strides = array<i32>} : memref<8x128xf32, #tpu.memory_space<vmem>>, vector<3x128xf32>,
    return
  }
  func.func @transform_0(%arg0: i32) -> (i32, i32) {
    %c0_i32 = arith.constant 0 : i32
    %c0_i32_0 = arith.constant 0 : i32
    return %c0_i32, %arg0 : i32, i32
  }
  func.func @transform_1(%arg0: i32) -> (i32, i32) {
    %c0_i32 = arith.constant 0 : i32
    %c0_i32_0 = arith.constant 0 : i32
    return %c0_i32, %arg0 : i32, i32
  }
  func.func @transform_2(%arg0: i32) -> (i32, i32) {
    %c0_i32 = arith.constant 0 : i32
    %c0_i32_0 = arith.constant 0 : i32
    return %c0_i32, %arg0 : i32, i32
  }
  func.func @transform_3(%arg0: i32) -> (i32, i32) {
    %c0_i32 = arith.constant 0 : i32
    %c0_i32_0 = arith.constant 0 : i32
    return %c0_i32, %arg0 : i32, i32
  }
}

</mosaic_0001>

<llo_original>
// kernel: tpu_custom_call.1
$region0: #{tpu_custom_call.1}
  #allocation0 [shape = 'u32[]', space=smem, size = 0x4, offset = 0x4, fixed_abs, tag = 'smem constant byte address 0x4 - core index']
  #allocation1 [shape = 'u32[144,128]{1,0:T(1,128)}', space=vmem, size = 0x12000, scoped, tag = 'internal scratch']
  %s0 = inlined_call_operand.hbm [shape: f32[8,128], index: 0, kind: input, shape index: {}]
  %s1 = inlined_call_operand.vmem [shape: s32[1,128], index: 1, kind: input, shape index: {}]
  %s2 = inlined_call_operand.hbm [shape: f32[8,128], index: 2, kind: input, shape index: {}]
  %s3 = inlined_call_operand.hbm [shape: f32[8,128], index: 3, kind: output, shape index: {}]
  %s4 = sld [smem:[#allocation0]]
  $region30: #{tpu_custom_call.1} parent=0
    _
  %s6 = ssub.s32 1, %s4
  %s7 = scalar_select 0, %s6, %s4
  $region1: #{tpu_custom_call.1} parent=0
    #allocation2 [shape = 'u8[4096]{0}', space=vmem, size = 0x1000, scoped, tag = 'input window, operand 0, single buffered']
    #allocation3 [shape = 's32[1]{0}', space=sflag, size = 0x4, scoped, tag = 'scoped memory for tpu_custom_call.1']
    #allocation4 [shape = 's32[1]{0}', space=sflag, size = 0x4, scoped, tag = 'scoped memory for tpu_custom_call.1']
    #allocation5 [shape = 'u8[4096]{0}', space=vmem, size = 0x1000, scoped, tag = 'input window, operand 2, single buffered']
    #allocation6 [shape = 's32[1]{0}', space=sflag, size = 0x4, scoped, tag = 'scoped memory for tpu_custom_call.1']
    #allocation7 [shape = 'u8[4096]{0}', space=vmem, size = 0x1000, scoped, tag = 'output window, operand 0, single buffered']
    %8 = vsyncpa [#allocation3], 0
    %9 = vsyncpa [#allocation6], 0
    %10 = vsyncpa [#allocation4], 0
    // Predicated region
    $region2: #{tpu_custom_call.1} parent=1 // pred_check
      _
    $region3: #{tpu_custom_call.1} parent=1 // pred_check_branch
      %12 = sbr.rel (0) target = $region5
    $region4: #{tpu_custom_call.1} parent=1 // pred_region
      %s14 = ssub.s32 128, 128
      %15 = vsyncadd [#allocation3], %s14
      %s17 = sshll.u32 [#allocation2], 4
      %s18 = int_to_ptr.vmem [resolvable:$true] %s17
      %20 = dma.hbm_to_vmem [thread:$0]  %s0, 128, %s18, [#allocation3]
    $region5: #{tpu_custom_call.1} parent=1 // pred_fallthru
      _
    // Predicated region
    $region6: #{tpu_custom_call.1} parent=1 // pred_check
      _
    $region7: #{tpu_custom_call.1} parent=1 // pred_check_branch
      %22 = sbr.rel (0) target = $region9
    $region8: #{tpu_custom_call.1} parent=1 // pred_region
      _
    $region9: #{tpu_custom_call.1} parent=1 // pred_fallthru
      _
    // Predicated region
    $region10: #{tpu_custom_call.1} parent=1 // pred_check
      _
    $region11: #{tpu_custom_call.1} parent=1 // pred_check_branch
      %24 = sbr.rel (0) target = $region13
    $region12: #{tpu_custom_call.1} parent=1 // pred_region
      %s26 = ssub.s32 128, 128
      %27 = vsyncadd [#allocation6], %s26
      %s29 = sshll.u32 [#allocation5], 4
      %s30 = int_to_ptr.vmem [resolvable:$true] %s29
      %32 = dma.hbm_to_vmem [thread:$0]  %s2, 128, %s30, [#allocation6]
    $region13: #{tpu_custom_call.1} parent=1 // pred_fallthru
      _
    // Predicated region
    $region14: #{tpu_custom_call.1} parent=1 // pred_check
      _
    $region15: #{tpu_custom_call.1} parent=1 // pred_check_branch
      %34 = sbr.rel (0) target = $region17
    $region16: #{tpu_custom_call.1} parent=1 // pred_region
      %35 = dma.done [#allocation3], 128
    $region17: #{tpu_custom_call.1} parent=1 // pred_fallthru
      _
    // Predicated region
    $region18: #{tpu_custom_call.1} parent=1 // pred_check
      _
    $region19: #{tpu_custom_call.1} parent=1 // pred_check_branch
      %37 = sbr.rel (0) target = $region21
    $region20: #{tpu_custom_call.1} parent=1 // pred_region
      %38 = dma.done [#allocation6], 128
    $region21: #{tpu_custom_call.1} parent=1 // pred_fallthru
      _
    %v39 = vld [vmem:[#allocation2] sm:$0xff]
    %v40 = vld [vmem:[%s1] sm:$0x1]
    %v41 = vld [vmem:[#allocation5] sm:$0xf]
    %v42 = vld [vmem:[#allocation5 + $0x4] sm:$0xf]
    %v43 = vrot.slane %v39, 4
    %v44 = vmax.f32 %v39, %v43
    %v45 = vrot.slane %v44, 2
    %v46 = vmax.f32 %v44, %v45
    %v47 = vrot.slane %v46, 1
    %v48 = vmax.f32 %v46, %v47
    %v49 = vsub.f32 %v39, %v48
    %v50 = vmul.f32 %v49, 1.442695
    %v51 = vpow.pop %v50
    %v52 = vrot.slane %v51, 4
    %v53 = vadd.f32 %v51, %v52
    %v54 = vrot.slane %v53, 2
    %v55 = vadd.f32 %v53, %v54
    %v56 = vrot.slane %v55, 1
    %v57 = vadd.f32 %v55, %v56
    %v58 = vlog2.pop %v57
    %v59 = vmul.f32 %v58, 0.6931472
    %v60 = vlaneseq
    %v61 = vshrl.u32 %v60, 7
    %v62 = vlaneseq
    %v63 = vshrl.u32 %v62, 7
    %v64 = vsub.s32 0, %v63
    %v65 = vrot.slane %v40, %v64
    %vm66 = vcmp.eq.s32.totalorder %v61, %v65
    %v67 = vsel %vm66, %v49, 0.0
    %v68 = vrot.slane %v67, 4
    %v69 = vadd.f32 %v67, %v68
    %v70 = vrot.slane %v69, 2
    %v71 = vadd.f32 %v69, %v70
    %v72 = vrot.slane %v71, 1
    %v73 = vadd.f32 %v71, %v72
    %v74 = vsub.f32 %v59, %v73
    %v75 = vsub.f32 0.0, %v74
    %v76 = vmul.f32 %v75, 1.442695
    %v77 = vpow.pop %v76
    %v78 = vsub.f32 1.0, %v77
    %v79 = vmul.f32 %v78, %v78
    %v80 = vmul.f32 %v79, 0.0234375
    %v81 = vsub.f32 %v41, %v42
    %v82 = vand.u32 2147483647, %v81
    %vm83 = vcmp.lt.f32.partialorder %v82, 1.0
    %v84 = vmul.f32 %v81, 0.5
    %v85 = vmul.f32 %v84, %v81
    %v86 = vsub.f32 %v82, 0.5
    %v87 = vsel %vm83, %v85, %v86
    %v88 = vmul.f32 %v80, %v87
    %89 = vst [vmem:[#allocation7] sm:$0xf] %v88
    %v90 = vmul.f32 %v80, %v74
    %91 = vst [vmem:[#allocation7 + $0x4] sm:$0x1] %v90
    %92 = vst [vmem:[#allocation7 + $0x5] sm:$0x7] 0.0
    // Predicated region
    $region22: #{tpu_custom_call.1} parent=1 // pred_check
      _
    $region23: #{tpu_custom_call.1} parent=1 // pred_check_branch
      %94 = sbr.rel (0) target = $region25
    $region24: #{tpu_custom_call.1} parent=1 // pred_region
      %s96 = ssub.s32 128, 128
      %97 = vsyncadd [#allocation4], %s96
      %s99 = sshll.u32 [#allocation7], 4
      %s100 = int_to_ptr.vmem [resolvable:$true] %s99
      %102 = dma.vmem_to_hbm [thread:$0]  %s100, 128, %s3, [#allocation4]
    $region25: #{tpu_custom_call.1} parent=1 // pred_fallthru
      _
    // Predicated region
    $region26: #{tpu_custom_call.1} parent=1 // pred_check
      _
    $region27: #{tpu_custom_call.1} parent=1 // pred_check_branch
      %104 = sbr.rel (0) target = $region29
    $region28: #{tpu_custom_call.1} parent=1 // pred_region
      %105 = dma.done [#allocation4], 128
    $region29: #{tpu_custom_call.1} parent=1 // pred_fallthru
      _
    %106 = vsyncpa [#allocation3], 1
    %107 = vsyncpa [#allocation6], 1
    %108 = vsyncpa [#allocation4], 1

</llo_original>
